<compile_context>
chip_gen: v7x
topology: tpu7x:2x2x1
jax: 0.10.0
libtpu: 0.0.40
codegen_flags: <defaults>
</compile_context>

<pallas_src>
import jax
import jax.numpy as jnp
from jax.experimental import pallas as pl
from jax.experimental.pallas import tpu as pltpu

KERNEL = 6
STRIDE = 2
PAD_H = 3
PAD_W = 1

# Pair-decomposition bookkeeping (stride 2, even kernel, odd pads -> each
# output window is exactly NPAIR stride-aligned pairs).  Guard against future
# parameter edits silently breaking the scheme.
assert STRIDE == 2 and KERNEL % STRIDE == 0
assert PAD_H % 2 == 1 and PAD_W % 2 == 1
assert PAD_H <= KERNEL // 2 and PAD_W <= KERNEL // 2   # every window has a valid tap
NPAIR = KERNEL // STRIDE        # pairs per window  (= 3)
V_OFF = (PAD_H - 1) // 2        # first pair index for output row  oh is oh - V_OFF
H_OFF = (PAD_W - 1) // 2        # first pair index for output col  ow is ow - H_OFF


def _neg_fill(shape, dtype):
    if jnp.issubdtype(dtype, jnp.floating):
        return jnp.full(shape, -jnp.inf, dtype)
    return jnp.full(shape, jnp.iinfo(dtype).min, dtype)


def _maxpool_kernel(x_ref, o_ref):
    # x_ref: (1, Cb, H, W)   NCHW input block (one image, Cb channel planes)
    # o_ref: (1, Cb, Ho, Wo) pooled output block
    _, cb, H, W = x_ref.shape
    _, _, Ho, Wo = o_ref.shape
    dtype = x_ref.dtype

    x = x_ref[0]                                        # (Cb, H, W)

    # ---- Pass 1: vertical max (H = sublane axis) ---------------------------
    # Pair maxima p[i] = max(x[2i-1], x[2i]); out-of-range taps are exactly
    # the -inf pads and are dropped.  A fully-padded pair becomes a -inf slab.
    # (Loops are trace-time Python: Ho/Wo are small.  For big feature maps
    #  switch to lax.fori_loop(..., unroll=True).)
    def vpair(i):
        taps = [k for k in (STRIDE * i - 1, STRIDE * i) if 0 <= k < H]
        if not taps:
            return _neg_fill((cb, 1, W), dtype)
        acc = x[:, taps[0]:taps[0] + 1, :]
        for k in taps[1:]:
            acc = jnp.maximum(acc, x[:, k:k + 1, :])
        return acc

    P = jnp.concatenate(
        [vpair(i) for i in range(-V_OFF, Ho - V_OFF + NPAIR - 1)], axis=1)
    col = P[:, 0:Ho, :]                                 # (Cb, Ho, W)
    for t in range(1, NPAIR):
        col = jnp.maximum(col, P[:, t:t + Ho, :])

    # ---- Pass 2: horizontal max (W = lane axis, shifts go to the XLU) ------
    def hpair(j):
        taps = [k for k in (STRIDE * j - 1, STRIDE * j) if 0 <= k < W]
        if not taps:
            return _neg_fill((cb, Ho, 1), dtype)
        acc = col[:, :, taps[0]:taps[0] + 1]
        for k in taps[1:]:
            acc = jnp.maximum(acc, col[:, :, k:k + 1])
        return acc

    Q = jnp.concatenate(
        [hpair(j) for j in range(-H_OFF, Wo - H_OFF + NPAIR - 1)], axis=2)
    out = Q[:, :, 0:Wo]                                 # (Cb, Ho, Wo)
    for t in range(1, NPAIR):
        out = jnp.maximum(out, Q[:, :, t:t + Wo])

    o_ref[0] = out                                      # single full-block store


def maxpool2d_pallas(x):
    """MaxPool2d(6, stride=2, padding=(3, 1)) on an NCHW tensor (no HBM transposes)."""
    n, c, h, w = x.shape
    ho = (h + 2 * PAD_H - KERNEL) // STRIDE + 1
    wo = (w + 2 * PAD_W - KERNEL) // STRIDE + 1

    # Channel blocking keeps one block's double-buffered (in + out) footprint
    # under ~4 MiB so the tiling fits every generation's scoped-VMEM default
    # (16 MiB v5e, 32 MiB v6e/v7x) without touching vmem_limit_bytes.
    itemsize = jnp.dtype(x.dtype).itemsize
    per_chan_bytes = 2 * (h * w + ho * wo) * itemsize
    cb = int(max(1, min(c, (4 << 20) // max(per_chan_bytes, 1))))
    n_cblk = pl.cdiv(c, cb)
    # TODO(synk): for feature maps where even cb=1 exceeds the budget, add an
    # H-tile grid axis with a (KERNEL - STRIDE)-row halo instead of whole-H blocks.

    # Note: if c % cb != 0 the trailing block is padded; padded input channels
    # only feed padded output channels, whose writes are dropped by Pallas.
    return pl.pallas_call(
        _maxpool_kernel,
        out_shape=jax.ShapeDtypeStruct((n, c, ho, wo), x.dtype),
        grid=(n, n_cblk),
        in_specs=[pl.BlockSpec((1, cb, h, w), lambda i, j: (i, j, 0, 0))],
        out_specs=pl.BlockSpec((1, cb, ho, wo), lambda i, j: (i, j, 0, 0)),
        compiler_params=pltpu.CompilerParams(
            dimension_semantics=("parallel", "parallel")),
    )(x)


def maxpool2d_reference(x):
    return jax.lax.reduce_window(
        x, -jnp.inf, jax.lax.max,
        window_dimensions=(1, 1, KERNEL, KERNEL),
        window_strides=(1, 1, STRIDE, STRIDE),
        padding=((0, 0), (0, 0), (PAD_H, PAD_H), (PAD_W, PAD_W)),
    )


if __name__ == "__main__":
    key = jax.random.PRNGKey(0)
    # Small NCHW input consistent with the module's forward.
    x = jax.random.normal(key, (2, 4, 16, 16), dtype=jnp.float32)

    out = jax.block_until_ready(maxpool2d_pallas(x))
    ref = maxpool2d_reference(x)

    assert out.shape == (2, 4, 9, 7), out.shape
    assert out.dtype == jnp.float32
    # Max pooling is exact -> bitwise comparison catches layout/indexing bugs.
    assert jnp.array_equal(out, ref), "mismatch vs lax.reduce_window reference"

    print("KERNEL_OK")
</pallas_src>

<mosaic_0001>
module attributes {stable_mosaic.version = 11 : i64} {
  func.func @_maxpool_kernel(%arg0: i32, %arg1: i32, %arg2: memref<1x4x16x16xf32, #tpu.memory_space<vmem>>, %arg3: memref<1x4x9x7xf32, #tpu.memory_space<vmem>>) attributes {dimension_semantics = [#tpu.dimension_semantics<parallel>, #tpu.dimension_semantics<parallel>], iteration_bounds = array<i64: 2, 1>, scalar_prefetch = 0 : i64, scratch_operands = 0 : i64, tpu.core_type = #tpu.core_type<tc>, window_params = [{transform_indices = @transform_0, window_bounds = array<i64: 1, 4, 16, 16>}, {transform_indices = @transform_1, window_bounds = array<i64: 1, 4, 9, 7>}]} {
    %c0 = arith.constant 0 : index
    %c0_0 = arith.constant 0 : index
    %c0_1 = arith.constant 0 : index
    %c0_2 = arith.constant 0 : index
    %0 = vector.load %arg2[%c0, %c0_0, %c0_1, %c0_2] : memref<1x4x16x16xf32, #tpu.memory_space<vmem>>, vector<1x4x16x16xf32>
    %1 = vector.shape_cast %0 : vector<1x4x16x16xf32> to vector<4x16x16xf32>
    %cst = arith.constant 0xFF800000 : f32
    %2 = vector.broadcast %cst : f32 to vector<4x1x16xf32>
    %3 = vector.extract_strided_slice %1 {offsets = [0, 0, 0], sizes = [4, 1, 16], strides = [1, 1, 1]} : vector<4x16x16xf32> to vector<4x1x16xf32>
    %4 = vector.extract_strided_slice %1 {offsets = [0, 1, 0], sizes = [4, 1, 16], strides = [1, 1, 1]} : vector<4x16x16xf32> to vector<4x1x16xf32>
    %5 = vector.extract_strided_slice %1 {offsets = [0, 2, 0], sizes = [4, 1, 16], strides = [1, 1, 1]} : vector<4x16x16xf32> to vector<4x1x16xf32>
    %6 = arith.maximumf %4, %5 : vector<4x1x16xf32>
    %7 = vector.extract_strided_slice %1 {offsets = [0, 3, 0], sizes = [4, 1, 16], strides = [1, 1, 1]} : vector<4x16x16xf32> to vector<4x1x16xf32>
    %8 = vector.extract_strided_slice %1 {offsets = [0, 4, 0], sizes = [4, 1, 16], strides = [1, 1, 1]} : vector<4x16x16xf32> to vector<4x1x16xf32>
    %9 = arith.maximumf %7, %8 : vector<4x1x16xf32>
    %10 = vector.extract_strided_slice %1 {offsets = [0, 5, 0], sizes = [4, 1, 16], strides = [1, 1, 1]} : vector<4x16x16xf32> to vector<4x1x16xf32>
    %11 = vector.extract_strided_slice %1 {offsets = [0, 6, 0], sizes = [4, 1, 16], strides = [1, 1, 1]} : vector<4x16x16xf32> to vector<4x1x16xf32>
    %12 = arith.maximumf %10, %11 : vector<4x1x16xf32>
    %13 = vector.extract_strided_slice %1 {offsets = [0, 7, 0], sizes = [4, 1, 16], strides = [1, 1, 1]} : vector<4x16x16xf32> to vector<4x1x16xf32>
    %14 = vector.extract_strided_slice %1 {offsets = [0, 8, 0], sizes = [4, 1, 16], strides = [1, 1, 1]} : vector<4x16x16xf32> to vector<4x1x16xf32>
    %15 = arith.maximumf %13, %14 : vector<4x1x16xf32>
    %16 = vector.extract_strided_slice %1 {offsets = [0, 9, 0], sizes = [4, 1, 16], strides = [1, 1, 1]} : vector<4x16x16xf32> to vector<4x1x16xf32>
    %17 = vector.extract_strided_slice %1 {offsets = [0, 10, 0], sizes = [4, 1, 16], strides = [1, 1, 1]} : vector<4x16x16xf32> to vector<4x1x16xf32>
    %18 = arith.maximumf %16, %17 : vector<4x1x16xf32>
    %19 = vector.extract_strided_slice %1 {offsets = [0, 11, 0], sizes = [4, 1, 16], strides = [1, 1, 1]} : vector<4x16x16xf32> to vector<4x1x16xf32>
    %20 = vector.extract_strided_slice %1 {offsets = [0, 12, 0], sizes = [4, 1, 16], strides = [1, 1, 1]} : vector<4x16x16xf32> to vector<4x1x16xf32>
    %21 = arith.maximumf %19, %20 : vector<4x1x16xf32>
    %22 = vector.extract_strided_slice %1 {offsets = [0, 13, 0], sizes = [4, 1, 16], strides = [1, 1, 1]} : vector<4x16x16xf32> to vector<4x1x16xf32>
    %23 = vector.extract_strided_slice %1 {offsets = [0, 14, 0], sizes = [4, 1, 16], strides = [1, 1, 1]} : vector<4x16x16xf32> to vector<4x1x16xf32>
    %24 = arith.maximumf %22, %23 : vector<4x1x16xf32>
    %25 = vector.extract_strided_slice %1 {offsets = [0, 15, 0], sizes = [4, 1, 16], strides = [1, 1, 1]} : vector<4x16x16xf32> to vector<4x1x16xf32>
    %cst_3 = arith.constant 0xFF800000 : f32
    %26 = vector.broadcast %cst_3 : f32 to vector<4x1x16xf32>
    %27 = tpu.concatenate %2, %3, %6, %9, %12, %15, %18, %21, %24, %25, %26 in 1 : vector<4x1x16xf32>, vector<4x1x16xf32>, vector<4x1x16xf32>, vector<4x1x16xf32>, vector<4x1x16xf32>, vector<4x1x16xf32>, vector<4x1x16xf32>, vector<4x1x16xf32>, vector<4x1x16xf32>, vector<4x1x16xf32>, vector<4x1x16xf32> -> vector<4x11x16xf32>
    %28 = vector.extract_strided_slice %27 {offsets = [0, 0, 0], sizes = [4, 9, 16], strides = [1, 1, 1]} : vector<4x11x16xf32> to vector<4x9x16xf32>
    %29 = vector.extract_strided_slice %27 {offsets = [0, 1, 0], sizes = [4, 9, 16], strides = [1, 1, 1]} : vector<4x11x16xf32> to vector<4x9x16xf32>
    %30 = arith.maximumf %28, %29 : vector<4x9x16xf32>
    %31 = vector.extract_strided_slice %27 {offsets = [0, 2, 0], sizes = [4, 9, 16], strides = [1, 1, 1]} : vector<4x11x16xf32> to vector<4x9x16xf32>
    %32 = arith.maximumf %30, %31 : vector<4x9x16xf32>
    %33 = vector.extract_strided_slice %32 {offsets = [0, 0, 0], sizes = [4, 9, 1], strides = [1, 1, 1]} : vector<4x9x16xf32> to vector<4x9x1xf32>
    %34 = vector.extract_strided_slice %32 {offsets = [0, 0, 1], sizes = [4, 9, 1], strides = [1, 1, 1]} : vector<4x9x16xf32> to vector<4x9x1xf32>
    %35 = vector.extract_strided_slice %32 {offsets = [0, 0, 2], sizes = [4, 9, 1], strides = [1, 1, 1]} : vector<4x9x16xf32> to vector<4x9x1xf32>
    %36 = arith.maximumf %34, %35 : vector<4x9x1xf32>
    %37 = vector.extract_strided_slice %32 {offsets = [0, 0, 3], sizes = [4, 9, 1], strides = [1, 1, 1]} : vector<4x9x16xf32> to vector<4x9x1xf32>
    %38 = vector.extract_strided_slice %32 {offsets = [0, 0, 4], sizes = [4, 9, 1], strides = [1, 1, 1]} : vector<4x9x16xf32> to vector<4x9x1xf32>
    %39 = arith.maximumf %37, %38 : vector<4x9x1xf32>
    %40 = vector.extract_strided_slice %32 {offsets = [0, 0, 5], sizes = [4, 9, 1], strides = [1, 1, 1]} : vector<4x9x16xf32> to vector<4x9x1xf32>
    %41 = vector.extract_strided_slice %32 {offsets = [0, 0, 6], sizes = [4, 9, 1], strides = [1, 1, 1]} : vector<4x9x16xf32> to vector<4x9x1xf32>
    %42 = arith.maximumf %40, %41 : vector<4x9x1xf32>
    %43 = vector.extract_strided_slice %32 {offsets = [0, 0, 7], sizes = [4, 9, 1], strides = [1, 1, 1]} : vector<4x9x16xf32> to vector<4x9x1xf32>
    %44 = vector.extract_strided_slice %32 {offsets = [0, 0, 8], sizes = [4, 9, 1], strides = [1, 1, 1]} : vector<4x9x16xf32> to vector<4x9x1xf32>
    %45 = arith.maximumf %43, %44 : vector<4x9x1xf32>
    %46 = vector.extract_strided_slice %32 {offsets = [0, 0, 9], sizes = [4, 9, 1], strides = [1, 1, 1]} : vector<4x9x16xf32> to vector<4x9x1xf32>
    %47 = vector.extract_strided_slice %32 {offsets = [0, 0, 10], sizes = [4, 9, 1], strides = [1, 1, 1]} : vector<4x9x16xf32> to vector<4x9x1xf32>
    %48 = arith.maximumf %46, %47 : vector<4x9x1xf32>
    %49 = vector.extract_strided_slice %32 {offsets = [0, 0, 11], sizes = [4, 9, 1], strides = [1, 1, 1]} : vector<4x9x16xf32> to vector<4x9x1xf32>
    %50 = vector.extract_strided_slice %32 {offsets = [0, 0, 12], sizes = [4, 9, 1], strides = [1, 1, 1]} : vector<4x9x16xf32> to vector<4x9x1xf32>
    %51 = arith.maximumf %49, %50 : vector<4x9x1xf32>
    %52 = vector.extract_strided_slice %32 {offsets = [0, 0, 13], sizes = [4, 9, 1], strides = [1, 1, 1]} : vector<4x9x16xf32> to vector<4x9x1xf32>
    %53 = vector.extract_strided_slice %32 {offsets = [0, 0, 14], sizes = [4, 9, 1], strides = [1, 1, 1]} : vector<4x9x16xf32> to vector<4x9x1xf32>
    %54 = arith.maximumf %52, %53 : vector<4x9x1xf32>
    %55 = vector.extract_strided_slice %32 {offsets = [0, 0, 15], sizes = [4, 9, 1], strides = [1, 1, 1]} : vector<4x9x16xf32> to vector<4x9x1xf32>
    %56 = tpu.concatenate %33, %36, %39, %42, %45, %48, %51, %54, %55 in 2 : vector<4x9x1xf32>, vector<4x9x1xf32>, vector<4x9x1xf32>, vector<4x9x1xf32>, vector<4x9x1xf32>, vector<4x9x1xf32>, vector<4x9x1xf32>, vector<4x9x1xf32>, vector<4x9x1xf32> -> vector<4x9x9xf32>
    %57 = vector.extract_strided_slice %56 {offsets = [0, 0, 0], sizes = [4, 9, 7], strides = [1, 1, 1]} : vector<4x9x9xf32> to vector<4x9x7xf32>
    %58 = vector.extract_strided_slice %56 {offsets = [0, 0, 1], sizes = [4, 9, 7], strides = [1, 1, 1]} : vector<4x9x9xf32> to vector<4x9x7xf32>
    %59 = arith.maximumf %57, %58 : vector<4x9x7xf32>
    %60 = vector.extract_strided_slice %56 {offsets = [0, 0, 2], sizes = [4, 9, 7], strides = [1, 1, 1]} : vector<4x9x9xf32> to vector<4x9x7xf32>
    %61 = arith.maximumf %59, %60 : vector<4x9x7xf32>
    %c0_4 = arith.constant 0 : index
    %c0_5 = arith.constant 0 : index
    %c0_6 = arith.constant 0 : index
    %c0_7 = arith.constant 0 : index
    %62 = vector.load %arg3[%c0_4, %c0_5, %c0_6, %c0_7] : memref<1x4x9x7xf32, #tpu.memory_space<vmem>>, vector<1x4x9x7xf32>
    %63 = vector.shape_cast %62 : vector<1x4x9x7xf32> to vector<4x9x7xf32>
    %64 = vector.shape_cast %61 : vector<4x9x7xf32> to vector<1x4x9x7xf32>
    tpu.vector_store %arg3[%c0_4, %c0_5, %c0_6, %c0_7], %64 {strides = array<i32>} : memref<1x4x9x7xf32, #tpu.memory_space<vmem>>, vector<1x4x9x7xf32>,
    return
  }
  func.func @transform_0(%arg0: i32, %arg1: i32) -> (i32, i32, i32, i32) {
    %c0_i32 = arith.constant 0 : i32
    %c0_i32_0 = arith.constant 0 : i32
    %c0_i32_1 = arith.constant 0 : i32
    return %arg0, %arg1, %c0_i32, %c0_i32_0 : i32, i32, i32, i32
  }
  func.func @transform_1(%arg0: i32, %arg1: i32) -> (i32, i32, i32, i32) {
    %c0_i32 = arith.constant 0 : i32
    %c0_i32_0 = arith.constant 0 : i32
    %c0_i32_1 = arith.constant 0 : i32
    return %arg0, %arg1, %c0_i32, %c0_i32_0 : i32, i32, i32, i32
  }
}

</mosaic_0001>

<llo_original>
// kernel: tpu_custom_call.1
$region0: #{tpu_custom_call.1}
  #allocation0 [shape = 'u32[]', space=smem, size = 0x4, offset = 0x4, fixed_abs, tag = 'smem constant byte address 0x4 - core index']
  #allocation1 [shape = 'u32[144,128]{1,0:T(1,128)}', space=vmem, size = 0x12000, scoped, tag = 'internal scratch']
  %s0 = inlined_call_operand.hbm [shape: f32[2,4,16,16], index: 0, kind: input, shape index: {}]
  %s1 = inlined_call_operand.vmem [shape: f32[2,4,9,7], index: 1, kind: output, shape index: {}]
  %s2 = sld [smem:[#allocation0]]
  $region41: #{tpu_custom_call.1} parent=0
    _
  %s4 = ssub.s32 1, %s2
  %s5 = scalar_select 0, %s4, %s2
  $region1: #{tpu_custom_call.1} parent=0
    #allocation2 [shape = 'u8[65536]{0}', space=vmem, size = 0x10000, scoped, tag = 'input window, operand 0']
    #allocation3 [shape = 's32[2]{0}', space=sflag, size = 0x8, scoped, tag = 'scoped memory for tpu_custom_call.1']
    %6 = vsyncpa [#allocation3], 0
    %s7 = scalar_lea.sflag [#allocation3], 1
    %8 = vsyncpa %s7, 0
    loop: start=0, step=1, limit=4
    $region2: #{tpu_custom_call.1} parent=1 // loop_pre_header
      _
    $region3: #{tpu_custom_call.1} parent=1 // loop_header
      %s10 = sphi 0, %s14
      %p11 = scmp.ge.s32.totalorder %s10, 4
      %s17 = sphi 0, %s29
      %s18 = sphi 0, %s25
      %s19 = sphi 0, %s17
      %s20 = sphi 0, %s18
      %s21 = sphi 0, %s19
      %s22 = sphi 0, %s20
      %s34 = sphi 0, %s36
      %s37 = sphi 0, %s34
      %s38 = sphi 0, %s37
      %s54 = sphi 0, %s38
      %s62 = sphi 0, %s64
      %s65 = sphi 0, %s62
      %s66 = sphi 0, %s65
      %s82 = sphi 0, %s66
    $region4: #{tpu_custom_call.1} parent=1 // loop_header_branch
      %13 = sbr.rel (%p11) target = $region8
    $region5: #{tpu_custom_call.1} parent=1 // loop_body
      %s15 = ssub.s32 %s10, 1
      %s16 = ssub.s32 %s10, 2
      %s23 = sadd.s32 1, %s18
      %p24 = scmp.ge.s32.totalorder %s23, 1
      %s25 = scalar_select %p24, 0, %s23
      %s26 = sadd.s32 1, %s17
      %s27 = scalar_select %p24, %s26, %s17
      %p28 = scmp.ge.s32.totalorder %s27, 2
      %s29 = scalar_select %p28, 0, %s27
      %s30 = ssub.s32 %s17, %s29
      %s31 = ssub.s32 %s18, %s25
      %s32 = sor.u32 %s30, %s31
      %p33 = scmp.eq.s32.totalorder %s32, 0
      %s35 = sadd.s32 %s34, 1
      %s36 = scalar_select %p33, %s34, %s35
      %p39 = pneg %p33
      %p40 = scmp.eq.s32.totalorder %s10, 1
      %p41 = por %p39, %p40
      %p42 = scmp.ne.s32.totalorder %s34, %s37
      %p43 = scmp.eq.s32.totalorder %s10, 0
      %p44 = por %p42, %p43
      %p45 = scmp.ne.s32.totalorder %s34, %s37
      %p46 = scmp.eq.s32.totalorder %s15, 1
      %p47 = por %p45, %p46
      %p48 = scmp.ne.s32.totalorder %s37, %s38
      %p49 = scmp.eq.s32.totalorder %s15, 0
      %p50 = por %p48, %p49
      %p51 = scmp.ne.s32.totalorder %s37, %s38
      %p52 = scmp.eq.s32.totalorder %s16, 1
      %p53 = por %p51, %p52
      %p55 = scmp.ne.s32.totalorder %s38, %s54
      %p56 = scmp.eq.s32.totalorder %s16, 0
      %p57 = por %p55, %p56
      %s58 = ssub.s32 %s17, %s29
      %s59 = ssub.s32 %s18, %s25
      %s60 = sor.u32 %s58, %s59
      %p61 = scmp.eq.s32.totalorder %s60, 0
      %s63 = sadd.s32 %s62, 1
      %s64 = scalar_select %p61, %s62, %s63
      %p67 = pneg %p61
      %p68 = scmp.eq.s32.totalorder %s10, 1
      %p69 = por %p67, %p68
      %p70 = scmp.ne.s32.totalorder %s62, %s65
      %p71 = scmp.eq.s32.totalorder %s10, 0
      %p72 = por %p70, %p71
      %p73 = scmp.ne.s32.totalorder %s62, %s65
      %p74 = scmp.eq.s32.totalorder %s15, 1
      %p75 = por %p73, %p74
      %p76 = scmp.ne.s32.totalorder %s65, %s66
      %p77 = scmp.eq.s32.totalorder %s15, 0
      %p78 = por %p76, %p77
      %p79 = scmp.ne.s32.totalorder %s65, %s66
      %p80 = scmp.eq.s32.totalorder %s16, 1
      %p81 = por %p79, %p80
      %p83 = scmp.ne.s32.totalorder %s66, %s82
      %p84 = scmp.eq.s32.totalorder %s16, 0
      %p85 = por %p83, %p84
      %p86 = scmp.le.s32.totalorder 1, %s10
      %p87 = scmp.lt.s32.totalorder %s10, 3
      %p88 = pnand %p86, %p87
      %p89 = pneg %p88
      // Predicated region
      $region9: #{tpu_custom_call.1} parent=5 // pred_check
        _
      $region10: #{tpu_custom_call.1} parent=5 // pred_check_branch
        %91 = sbr.rel (%p88) target = $region12
      $region11: #{tpu_custom_call.1} parent=5 // pred_region
        %s92 = ssub.s32 %s10, 1
      $region12: #{tpu_custom_call.1} parent=5 // pred_fallthru
        _
      %p93 = scmp.lt.s32.totalorder %s10, 2
      // Predicated region
      $region13: #{tpu_custom_call.1} parent=5 // pred_check
        %p94 = pneg %p93
      $region14: #{tpu_custom_call.1} parent=5 // pred_check_branch
        %96 = sbr.rel (%p94) target = $region16
      $region15: #{tpu_custom_call.1} parent=5 // pred_region
        // Predicated region
        $region17: #{tpu_custom_call.1} parent=15 // pred_check
          %p97 = pneg %p44
        $region18: #{tpu_custom_call.1} parent=15 // pred_check_branch
          %99 = sbr.rel (%p97) target = $region20
        $region19: #{tpu_custom_call.1} parent=15 // pred_region
          %s100 = sand.u32 %s34, 1
          %s101 = scalar_lea.sflag [#allocation3], %s100
          %s102 = sand.u32 %s34, 1
          %s103 = smul.addr %s102, 64
          %s104 = scalar_lea.vmem [#allocation2], %s103
          %s105 = smul.u32 4, %s18
          %s107 = ssub.s32 1024, 1024
          %108 = vsyncadd %s101, %s107
          %s109 = smul.addr %s105, 2
          %s110 = smul.addr %s17, 8
          %s111 = sadd.s32 %s109, %s110
          %s112 = smul.addr %s111, 128
          %s113 = scalar_lea.hbm %s0, %s112
          %s114 = sshll.u32 %s104, 4
          %s115 = int_to_ptr.vmem [resolvable:$true] %s114
          %120 = dma.hbm_to_vmem [thread:$0]  %s113, 1024, %s115, %s101, 128, 128, 8
        $region20: #{tpu_custom_call.1} parent=15 // pred_fallthru
          _
      $region16: #{tpu_custom_call.1} parent=5 // pred_fallthru
        _
      %p121 = scmp.le.s32.totalorder 1, %s10
      %p122 = scmp.lt.s32.totalorder %s10, 3
      %p123 = pnand %p121, %p122
      %p124 = pneg %p123
      // Predicated region
      $region21: #{tpu_custom_call.1} parent=5 // pred_check
        _
      $region22: #{tpu_custom_call.1} parent=5 // pred_check_branch
        %126 = sbr.rel (%p123) target = $region24
      $region23: #{tpu_custom_call.1} parent=5 // pred_region
        %s127 = ssub.s32 %s10, 1
        %s128 = sand.u32 %s37, 1
        %s129 = scalar_lea.sflag [#allocation3], %s128
        %s130 = sand.u32 %s37, 1
        %s131 = smul.addr %s130, 64
        %s132 = scalar_lea.vmem [#allocation2], %s131
        // Predicated region
        $region25: #{tpu_custom_call.1} parent=23 // pred_check
          %p133 = pneg %p50
        $region26: #{tpu_custom_call.1} parent=23 // pred_check_branch
          %135 = sbr.rel (%p133) target = $region28
        $region27: #{tpu_custom_call.1} parent=23 // pred_region
          %136 = dma.done %s129, 1024
        $region28: #{tpu_custom_call.1} parent=23 // pred_fallthru
          _
        %s137 = sand.u32 %s37, 1
        %s138 = scalar_lea.sflag [#allocation3], %s137
        %s139 = sand.u32 %s37, 1
        %s140 = smul.addr %s139, 64
        %s141 = scalar_lea.vmem [#allocation2], %s140
        %p142 = pneg %p50
        %p143 = pneg %p47
        %p144 = pneg %p78
        %p145 = pneg %p75
        %s146 = smul.u32 4, %s20
        %p147 = scmp.lt.s32.totalorder %s19, 1
        %s148 = scalar_select %p147, %s19, 1
        %p149 = scmp.lt.s32.totalorder %s146, 3
        %s150 = scalar_select %p149, %s146, 3
        %s151 = smul.addr %s150, 2
        %s152 = smul.addr %s148, 8
        %s153 = sadd.s32 %s151, %s152
        %s154 = smul.addr %s153, 8
        %s155 = scalar_lea.vmem %s1, %s154
        %s156 = smul.u32 4, %s20
        %s157 = smul.u32 4, %s20
        %p158 = scmp.lt.s32.totalorder %s19, 1
        %s159 = scalar_select %p158, %s19, 1
        %p160 = scmp.lt.s32.totalorder %s157, 3
        %s161 = scalar_select %p160, %s157, 3
        %s162 = smul.addr %s161, 2
        %s163 = smul.addr %s159, 8
        %s164 = sadd.s32 %s162, %s163
        %s165 = smul.addr %s164, 8
        %s166 = scalar_lea.vmem %s1, %s165
        %s167 = smul.u32 4, %s20
        %v168 = vld [vmem:[%s132] sm:$0xff]
        %v169 = vld [vmem:[%s132 + $0x8] sm:$0xff]
        %v170 = vld [vmem:[%s132 + $0x10] sm:$0xff]
        %v171 = vld [vmem:[%s132 + $0x18] sm:$0xff]
        %v172 = vld [vmem:[%s132 + $0x20] sm:$0xff]
        %v173 = vld [vmem:[%s132 + $0x28] sm:$0xff]
        %v174 = vld [vmem:[%s132 + $0x30] sm:$0xff]
        %v175 = vld [vmem:[%s132 + $0x38] sm:$0xff]
        %v180 = vrot.slane %v168, 1
        %v181 = vrot.slane %v170, 1
        %v182 = vrot.slane %v172, 1
        %v183 = vrot.slane %v174, 1
        %v188 = vmax.f32 %v168, %v180
        %v189 = vmax.f32 %v170, %v181
        %v190 = vmax.f32 %v172, %v182
        %v191 = vmax.f32 %v174, %v183
        %v196 = vrot.slane %v169, 1
        %v197 = vrot.slane %v171, 1
        %v198 = vrot.slane %v173, 1
        %v199 = vrot.slane %v175, 1
        %v204 = vmax.f32 %v168, %v196
        %v205 = vmax.f32 %v170, %v197
        %v206 = vmax.f32 %v172, %v198
        %v207 = vmax.f32 %v174, %v199
        %v208 = vmax.f32 %v169, %v196
        %v209 = vmax.f32 %v171, %v197
        %v210 = vmax.f32 %v173, %v198
        %v211 = vmax.f32 %v175, %v199
        %v212 = vrot.slane %v168, 7
        %v213 = vrot.slane %v170, 7
        %v214 = vrot.slane %v172, 7
        %v215 = vrot.slane %v174, 7
        %v224 = vrot.slane %v188, 7
        %v225 = vrot.slane %v189, 7
        %v226 = vrot.slane %v190, 7
        %v227 = vrot.slane %v191, 7
        %v232 = vrot.slane %v188, 1
        %v233 = vrot.slane %v189, 1
        %v234 = vrot.slane %v190, 1
        %v235 = vrot.slane %v191, 1
        %v244 = vrot.slane %v204, 2
        %v245 = vrot.slane %v205, 2
        %v246 = vrot.slane %v206, 2
        %v247 = vrot.slane %v207, 2
        %v256 = vrot.slane %v208, 3
        %v257 = vrot.slane %v209, 3
        %v258 = vrot.slane %v210, 3
        %v259 = vrot.slane %v211, 3
        %v264 = vrot.slane %v208, 4
        %v265 = vrot.slane %v209, 4
        %v266 = vrot.slane %v210, 4
        %v267 = vrot.slane %v211, 4
        %v272 = vrot.slane %v208, 5
        %v273 = vrot.slane %v209, 5
        %v274 = vrot.slane %v210, 5
        %v275 = vrot.slane %v211, 5
        %v280 = vrot.slane %v169, 6
        %v281 = vrot.slane %v171, 6
        %v282 = vrot.slane %v173, 6
        %v283 = vrot.slane %v175, 6
        %vm288 = vcmask 1040384
        %v289 = vsel %vm288, -inf, %v212
        %v290 = vsel %vm288, -inf, %v213
        %v291 = vsel %vm288, -inf, %v214
        %v292 = vsel %vm288, -inf, %v215
        %vm293 = vcmask 1041408
        %v294 = vsel %vm293, %v289, %v224
        %v295 = vsel %vm293, %v290, %v225
        %v296 = vsel %vm293, %v291, %v226
        %v297 = vsel %vm293, %v292, %v227
        %vm298 = vcmask 1042432
        %v299 = vsel %vm298, %v294, %v188
        %v300 = vsel %vm298, %v295, %v189
        %v301 = vsel %vm298, %v296, %v190
        %v302 = vsel %vm298, %v297, %v191
        %vm303 = vcmask 1043456
        %v304 = vsel %vm303, %v299, %v232
        %v305 = vsel %vm303, %v300, %v233
        %v306 = vsel %vm303, %v301, %v234
        %v307 = vsel %vm303, %v302, %v235
        %vm308 = vcmask 1044480
        %v309 = vsel %vm308, %v304, %v244
        %v310 = vsel %vm308, %v305, %v245
        %v311 = vsel %vm308, %v306, %v246
        %v312 = vsel %vm308, %v307, %v247
        %vm313 = vcmask 1045504
        %v314 = vsel %vm313, %v309, %v256
        %v315 = vsel %vm313, %v310, %v257
        %v316 = vsel %vm313, %v311, %v258
        %v317 = vsel %vm313, %v312, %v259
        %vm318 = vcmask 1046528
        %v319 = vsel %vm318, %v314, %v264
        %v320 = vsel %vm318, %v315, %v265
        %v321 = vsel %vm318, %v316, %v266
        %v322 = vsel %vm318, %v317, %v267
        %v323 = vsel %vm288, %v272, %v280
        %v324 = vsel %vm288, %v273, %v281
        %v325 = vsel %vm288, %v274, %v282
        %v326 = vsel %vm288, %v275, %v283
        %v327 = vsel %vm293, %v323, -inf
        %v328 = vsel %vm293, %v324, -inf
        %v329 = vsel %vm293, %v325, -inf
        %v330 = vsel %vm293, %v326, -inf
        %v339 = vrot.slane %v319, 1
        %v340 = vrot.slane %v327, 1
        %v341 = vsel %vm318, %v339, %v340
        %v342 = vrot.slane %v320, 1
        %v343 = vrot.slane %v328, 1
        %v344 = vsel %vm318, %v342, %v343
        %v345 = vrot.slane %v321, 1
        %v346 = vrot.slane %v329, 1
        %v347 = vsel %vm318, %v345, %v346
        %v348 = vrot.slane %v322, 1
        %v349 = vrot.slane %v330, 1
        %v350 = vsel %vm318, %v348, %v349
        %v359 = vmax.f32 %v319, %v341
        %v360 = vmax.f32 %v327, %v340
        %v361 = vmax.f32 %v320, %v344
        %v362 = vmax.f32 %v328, %v343
        %v363 = vmax.f32 %v321, %v347
        %v364 = vmax.f32 %v329, %v346
        %v365 = vmax.f32 %v322, %v350
        %v366 = vmax.f32 %v330, %v349
        %v367 = vrot.slane %v319, 2
        %v368 = vrot.slane %v327, 2
        %v369 = vsel %vm313, %v367, %v368
        %v370 = vrot.slane %v320, 2
        %v371 = vrot.slane %v328, 2
        %v372 = vsel %vm313, %v370, %v371
        %v373 = vrot.slane %v321, 2
        %v374 = vrot.slane %v329, 2
        %v375 = vsel %vm313, %v373, %v374
        %v376 = vrot.slane %v322, 2
        %v377 = vrot.slane %v330, 2
        %v378 = vsel %vm313, %v376, %v377
        %v387 = vmax.f32 %v359, %v369
        %v388 = vmax.f32 %v360, %v368
        %v389 = vmax.f32 %v361, %v372
        %v390 = vmax.f32 %v362, %v371
        %v391 = vmax.f32 %v363, %v375
        %v392 = vmax.f32 %v364, %v374
        %v393 = vmax.f32 %v365, %v378
        %v394 = vmax.f32 %v366, %v377
        %403 = vrot.lane.b32.xlu0 %v387, 127
        %v404 = vpop.permute.xlu0 %403
        %405 = vrot.lane.b32.xlu0 %v388, 127
        %v406 = vpop.permute.xlu0 %405
        %407 = vrot.lane.b32.xlu0 %v389, 127
        %v408 = vpop.permute.xlu0 %407
        %409 = vrot.lane.b32.xlu0 %v390, 127
        %v410 = vpop.permute.xlu0 %409
        %411 = vrot.lane.b32.xlu0 %v391, 127
        %v412 = vpop.permute.xlu0 %411
        %413 = vrot.lane.b32.xlu0 %v392, 127
        %v414 = vpop.permute.xlu0 %413
        %415 = vrot.lane.b32.xlu0 %v393, 127
        %v416 = vpop.permute.xlu0 %415
        %417 = vrot.lane.b32.xlu0 %v394, 127
        %v418 = vpop.permute.xlu0 %417
        %v427 = vmax.f32 %v387, %v404
        %v428 = vmax.f32 %v388, %v406
        %v429 = vmax.f32 %v389, %v408
        %v430 = vmax.f32 %v390, %v410
        %v431 = vmax.f32 %v391, %v412
        %v432 = vmax.f32 %v392, %v414
        %v433 = vmax.f32 %v393, %v416
        %v434 = vmax.f32 %v394, %v418
        %443 = vrot.lane.b32.xlu0 %v427, 127
        %v444 = vpop.permute.xlu0 %443
        %445 = vrot.lane.b32.xlu0 %v428, 127
        %v446 = vpop.permute.xlu0 %445
        %447 = vrot.lane.b32.xlu0 %v429, 127
        %v448 = vpop.permute.xlu0 %447
        %449 = vrot.lane.b32.xlu0 %v430, 127
        %v450 = vpop.permute.xlu0 %449
        %451 = vrot.lane.b32.xlu0 %v431, 127
        %v452 = vpop.permute.xlu0 %451
        %453 = vrot.lane.b32.xlu0 %v432, 127
        %v454 = vpop.permute.xlu0 %453
        %455 = vrot.lane.b32.xlu0 %v433, 127
        %v456 = vpop.permute.xlu0 %455
        %457 = vrot.lane.b32.xlu0 %v434, 127
        %v458 = vpop.permute.xlu0 %457
        %467 = vrot.lane.b32.xlu0 %v427, 126
        %v468 = vpop.permute.xlu0 %467
        %469 = vrot.lane.b32.xlu0 %v428, 126
        %v470 = vpop.permute.xlu0 %469
        %471 = vrot.lane.b32.xlu0 %v429, 126
        %v472 = vpop.permute.xlu0 %471
        %473 = vrot.lane.b32.xlu0 %v430, 126
        %v474 = vpop.permute.xlu0 %473
        %475 = vrot.lane.b32.xlu0 %v431, 126
        %v476 = vpop.permute.xlu0 %475
        %477 = vrot.lane.b32.xlu0 %v432, 126
        %v478 = vpop.permute.xlu0 %477
        %479 = vrot.lane.b32.xlu0 %v433, 126
        %v480 = vpop.permute.xlu0 %479
        %481 = vrot.lane.b32.xlu0 %v434, 126
        %v482 = vpop.permute.xlu0 %481
        %491 = vrot.lane.b32.xlu0 %v427, 125
        %v492 = vpop.permute.xlu0 %491
        %493 = vrot.lane.b32.xlu0 %v428, 125
        %v494 = vpop.permute.xlu0 %493
        %495 = vrot.lane.b32.xlu0 %v429, 125
        %v496 = vpop.permute.xlu0 %495
        %497 = vrot.lane.b32.xlu0 %v430, 125
        %v498 = vpop.permute.xlu0 %497
        %499 = vrot.lane.b32.xlu0 %v431, 125
        %v500 = vpop.permute.xlu0 %499
        %501 = vrot.lane.b32.xlu0 %v432, 125
        %v502 = vpop.permute.xlu0 %501
        %503 = vrot.lane.b32.xlu0 %v433, 125
        %v504 = vpop.permute.xlu0 %503
        %505 = vrot.lane.b32.xlu0 %v434, 125
        %v506 = vpop.permute.xlu0 %505
        %515 = vrot.lane.b32.xlu0 %v427, 124
        %v516 = vpop.permute.xlu0 %515
        %517 = vrot.lane.b32.xlu0 %v428, 124
        %v518 = vpop.permute.xlu0 %517
        %519 = vrot.lane.b32.xlu0 %v429, 124
        %v520 = vpop.permute.xlu0 %519
        %521 = vrot.lane.b32.xlu0 %v430, 124
        %v522 = vpop.permute.xlu0 %521
        %523 = vrot.lane.b32.xlu0 %v431, 124
        %v524 = vpop.permute.xlu0 %523
        %525 = vrot.lane.b32.xlu0 %v432, 124
        %v526 = vpop.permute.xlu0 %525
        %527 = vrot.lane.b32.xlu0 %v433, 124
        %v528 = vpop.permute.xlu0 %527
        %529 = vrot.lane.b32.xlu0 %v434, 124
        %v530 = vpop.permute.xlu0 %529
        %539 = vrot.lane.b32.xlu0 %v427, 123
        %v540 = vpop.permute.xlu0 %539
        %541 = vrot.lane.b32.xlu0 %v428, 123
        %v542 = vpop.permute.xlu0 %541
        %543 = vrot.lane.b32.xlu0 %v429, 123
        %v544 = vpop.permute.xlu0 %543
        %545 = vrot.lane.b32.xlu0 %v430, 123
        %v546 = vpop.permute.xlu0 %545
        %547 = vrot.lane.b32.xlu0 %v431, 123
        %v548 = vpop.permute.xlu0 %547
        %549 = vrot.lane.b32.xlu0 %v432, 123
        %v550 = vpop.permute.xlu0 %549
        %551 = vrot.lane.b32.xlu0 %v433, 123
        %v552 = vpop.permute.xlu0 %551
        %553 = vrot.lane.b32.xlu0 %v434, 123
        %v554 = vpop.permute.xlu0 %553
        %563 = vrot.lane.b32.xlu0 %v427, 122
        %v564 = vpop.permute.xlu0 %563
        %565 = vrot.lane.b32.xlu0 %v428, 122
        %v566 = vpop.permute.xlu0 %565
        %567 = vrot.lane.b32.xlu0 %v429, 122
        %v568 = vpop.permute.xlu0 %567
        %569 = vrot.lane.b32.xlu0 %v430, 122
        %v570 = vpop.permute.xlu0 %569
        %571 = vrot.lane.b32.xlu0 %v431, 122
        %v572 = vpop.permute.xlu0 %571
        %573 = vrot.lane.b32.xlu0 %v432, 122
        %v574 = vpop.permute.xlu0 %573
        %575 = vrot.lane.b32.xlu0 %v433, 122
        %v576 = vpop.permute.xlu0 %575
        %577 = vrot.lane.b32.xlu0 %v434, 122
        %v578 = vpop.permute.xlu0 %577
        %587 = vrot.lane.b32.xlu0 %v387, 121
        %v588 = vpop.permute.xlu0 %587
        %589 = vrot.lane.b32.xlu0 %v388, 121
        %v590 = vpop.permute.xlu0 %589
        %591 = vrot.lane.b32.xlu0 %v389, 121
        %v592 = vpop.permute.xlu0 %591
        %593 = vrot.lane.b32.xlu0 %v390, 121
        %v594 = vpop.permute.xlu0 %593
        %595 = vrot.lane.b32.xlu0 %v391, 121
        %v596 = vpop.permute.xlu0 %595
        %597 = vrot.lane.b32.xlu0 %v392, 121
        %v598 = vpop.permute.xlu0 %597
        %599 = vrot.lane.b32.xlu0 %v393, 121
        %v600 = vpop.permute.xlu0 %599
        %601 = vrot.lane.b32.xlu0 %v394, 121
        %v602 = vpop.permute.xlu0 %601
        %vm611 = vcmask 7168
        %v612 = vsel %vm611, %v387, %v427
        %v613 = vsel %vm611, %v388, %v428
        %v614 = vsel %vm611, %v389, %v429
        %v615 = vsel %vm611, %v390, %v430
        %v616 = vsel %vm611, %v391, %v431
        %v617 = vsel %vm611, %v392, %v432
        %v618 = vsel %vm611, %v393, %v433
        %v619 = vsel %vm611, %v394, %v434
        %vm620 = vcmask 15360
        %v621 = vsel %vm620, %v612, %v444
        %v622 = vsel %vm620, %v613, %v446
        %v623 = vsel %vm620, %v614, %v448
        %v624 = vsel %vm620, %v615, %v450
        %v625 = vsel %vm620, %v616, %v452
        %v626 = vsel %vm620, %v617, %v454
        %v627 = vsel %vm620, %v618, %v456
        %v628 = vsel %vm620, %v619, %v458
        %vm629 = vcmask 23552
        %v630 = vsel %vm629, %v621, %v468
        %v631 = vsel %vm629, %v622, %v470
        %v632 = vsel %vm629, %v623, %v472
        %v633 = vsel %vm629, %v624, %v474
        %v634 = vsel %vm629, %v625, %v476
        %v635 = vsel %vm629, %v626, %v478
        %v636 = vsel %vm629, %v627, %v480
        %v637 = vsel %vm629, %v628, %v482
        %vm638 = vcmask 31744
        %v639 = vsel %vm638, %v630, %v492
        %v640 = vsel %vm638, %v631, %v494
        %v641 = vsel %vm638, %v632, %v496
        %v642 = vsel %vm638, %v633, %v498
        %v643 = vsel %vm638, %v634, %v500
        %v644 = vsel %vm638, %v635, %v502
        %v645 = vsel %vm638, %v636, %v504
        %v646 = vsel %vm638, %v637, %v506
        %vm647 = vcmask 39936
        %v648 = vsel %vm647, %v639, %v516
        %v649 = vsel %vm647, %v640, %v518
        %v650 = vsel %vm647, %v641, %v520
        %v651 = vsel %vm647, %v642, %v522
        %v652 = vsel %vm647, %v643, %v524
        %v653 = vsel %vm647, %v644, %v526
        %v654 = vsel %vm647, %v645, %v528
        %v655 = vsel %vm647, %v646, %v530
        %vm656 = vcmask 48128
        %v657 = vsel %vm656, %v648, %v540
        %v658 = vsel %vm656, %v649, %v542
        %v659 = vsel %vm656, %v650, %v544
        %v660 = vsel %vm656, %v651, %v546
        %v661 = vsel %vm656, %v652, %v548
        %v662 = vsel %vm656, %v653, %v550
        %v663 = vsel %vm656, %v654, %v552
        %v664 = vsel %vm656, %v655, %v554
        %vm665 = vcmask 56320
        %v666 = vsel %vm665, %v657, %v564
        %v667 = vsel %vm665, %v658, %v566
        %v668 = vsel %vm665, %v659, %v568
        %v669 = vsel %vm665, %v660, %v570
        %v670 = vsel %vm665, %v661, %v572
        %v671 = vsel %vm665, %v662, %v574
        %v672 = vsel %vm665, %v663, %v576
        %v673 = vsel %vm665, %v664, %v578
        %vm674 = vcmask 64512
        %v675 = vsel %vm674, %v666, %v588
        %v676 = vsel %vm674, %v667, %v590
        %v677 = vsel %vm674, %v668, %v592
        %v678 = vsel %vm674, %v669, %v594
        %v679 = vsel %vm674, %v670, %v596
        %v680 = vsel %vm674, %v671, %v598
        %v681 = vsel %vm674, %v672, %v600
        %v682 = vsel %vm674, %v673, %v602
        %691 = vrot.lane.b32.xlu0 %v675, 127
        %v692 = vpop.permute.xlu0 %691
        %693 = vrot.lane.b32.xlu0 %v676, 127
        %v694 = vpop.permute.xlu0 %693
        %695 = vrot.lane.b32.xlu0 %v677, 127
        %v696 = vpop.permute.xlu0 %695
        %697 = vrot.lane.b32.xlu0 %v678, 127
        %v698 = vpop.permute.xlu0 %697
        %699 = vrot.lane.b32.xlu0 %v679, 127
        %v700 = vpop.permute.xlu0 %699
        %701 = vrot.lane.b32.xlu0 %v680, 127
        %v702 = vpop.permute.xlu0 %701
        %703 = vrot.lane.b32.xlu0 %v681, 127
        %v704 = vpop.permute.xlu0 %703
        %705 = vrot.lane.b32.xlu0 %v682, 127
        %v706 = vpop.permute.xlu0 %705
        %v715 = vmax.f32 %v675, %v692
        %v716 = vmax.f32 %v676, %v694
        %v717 = vmax.f32 %v677, %v696
        %v718 = vmax.f32 %v678, %v698
        %v719 = vmax.f32 %v679, %v700
        %v720 = vmax.f32 %v680, %v702
        %v721 = vmax.f32 %v681, %v704
        %v722 = vmax.f32 %v682, %v706
        %723 = vrot.lane.b32.xlu0 %v675, 126
        %v724 = vpop.permute.xlu0 %723
        %725 = vrot.lane.b32.xlu0 %v676, 126
        %v726 = vpop.permute.xlu0 %725
        %727 = vrot.lane.b32.xlu0 %v677, 126
        %v728 = vpop.permute.xlu0 %727
        %729 = vrot.lane.b32.xlu0 %v678, 126
        %v730 = vpop.permute.xlu0 %729
        %731 = vrot.lane.b32.xlu0 %v679, 126
        %v732 = vpop.permute.xlu0 %731
        %733 = vrot.lane.b32.xlu0 %v680, 126
        %v734 = vpop.permute.xlu0 %733
        %735 = vrot.lane.b32.xlu0 %v681, 126
        %v736 = vpop.permute.xlu0 %735
        %737 = vrot.lane.b32.xlu0 %v682, 126
        %v738 = vpop.permute.xlu0 %737
        %v747 = vmax.f32 %v715, %v724
        %v748 = vmax.f32 %v716, %v726
        %v749 = vmax.f32 %v717, %v728
        %v750 = vmax.f32 %v718, %v730
        %v751 = vmax.f32 %v719, %v732
        %v752 = vmax.f32 %v720, %v734
        %v753 = vmax.f32 %v721, %v736
        %v754 = vmax.f32 %v722, %v738
        %755 = vst.msk [vmem:[%s166] sm:$0xff] %vm665, %v747
        %vm756 = vcmask 49152
        %757 = vst.msk [vmem:[%s166 + $0x8] sm:$0x1] %vm756, %v748
        %758 = vst.msk [vmem:[%s166 + $0x10] sm:$0xff] %vm665, %v749
        %759 = vst.msk [vmem:[%s166 + $0x18] sm:$0x1] %vm756, %v750
        %760 = vst.msk [vmem:[%s166 + $0x20] sm:$0xff] %vm665, %v751
        %761 = vst.msk [vmem:[%s166 + $0x28] sm:$0x1] %vm756, %v752
        %762 = vst.msk [vmem:[%s166 + $0x30] sm:$0xff] %vm665, %v753
        %763 = vst.msk [vmem:[%s166 + $0x38] sm:$0x1] %vm756, %v754
        %s764 = smul.u32 4, %s20
        %p765 = scmp.lt.s32.totalorder %s19, 1
        %s766 = scalar_select %p765, %s19, 1
        %p767 = scmp.lt.s32.totalorder %s764, 3
        %s768 = scalar_select %p767, %s764, 3
        %s769 = smul.addr %s768, 2
        %s770 = smul.addr %s766, 8
        %s771 = sadd.s32 %s769, %s770
        %s772 = smul.addr %s771, 8
        %s773 = scalar_lea.vmem %s1, %s772
        // Predicated region
        $region29: #{tpu_custom_call.1} parent=23 // pred_check
          %p774 = pneg %p75
        $region30: #{tpu_custom_call.1} parent=23 // pred_check_branch
          %776 = sbr.rel (%p774) target = $region32
        $region31: #{tpu_custom_call.1} parent=23 // pred_region
          %s777 = smul.u32 4, %s20
        $region32: #{tpu_custom_call.1} parent=23 // pred_fallthru
          _
      $region24: #{tpu_custom_call.1} parent=5 // pred_fallthru
        _
      %p778 = scmp.le.s32.totalorder 2, %s10
      // Predicated region
      $region33: #{tpu_custom_call.1} parent=5 // pred_check
        %p779 = pneg %p778
      $region34: #{tpu_custom_call.1} parent=5 // pred_check_branch
        %781 = sbr.rel (%p779) target = $region36
      $region35: #{tpu_custom_call.1} parent=5 // pred_region
        %s782 = ssub.s32 %s10, 2
        // Predicated region
        $region37: #{tpu_custom_call.1} parent=35 // pred_check
          %p783 = pneg %p81
        $region38: #{tpu_custom_call.1} parent=35 // pred_check_branch
          %785 = sbr.rel (%p783) target = $region40
        $region39: #{tpu_custom_call.1} parent=35 // pred_region
          %s786 = smul.u32 4, %s22
          %p787 = scmp.lt.s32.totalorder %s21, 1
          %s788 = scalar_select %p787, %s21, 1
          %p789 = scmp.lt.s32.totalorder %s786, 3
          %s790 = scalar_select %p789, %s786, 3
          %s791 = smul.addr %s790, 2
          %s792 = smul.addr %s788, 8
          %s793 = sadd.s32 %s791, %s792
          %s794 = smul.addr %s793, 8
          %s795 = scalar_lea.vmem %s1, %s794
        $region40: #{tpu_custom_call.1} parent=35 // pred_fallthru
          _
      $region36: #{tpu_custom_call.1} parent=5 // pred_fallthru
        _
    $region6: #{tpu_custom_call.1} parent=1 // loop_footer
      %s14 = sadd.s32 1, %s10
    $region7: #{tpu_custom_call.1} parent=1 // loop_footer_branch
      %9 = sbr.rel target = $region3
    $region8: #{tpu_custom_call.1} parent=1 // loop_exit
      _
    %796 = vsyncpa [#allocation3], 1
    %s797 = scalar_lea.sflag [#allocation3], 1
    %798 = vsyncpa %s797, 1

</llo_original>
